<compile_context>
chip_gen: v6e
topology: v6e:2x2x1
jax: 0.10.0
libtpu: 0.0.40
codegen_flags: <defaults>
</compile_context>

<pallas_src>
import jax
import jax.numpy as jnp
from jax.experimental import pallas as pl
from jax.experimental.pallas import tpu as pltpu


def _gather_rows_kernel(idx_ref, table_ref, out_ref):
    """Gather rows of the VMEM-resident stacked table into the output tile.

    idx_ref:   SMEM (N_pad,) int32  -- row indices (scalar-prefetched)
    table_ref: VMEM (L*V, D) f32    -- whole table, resident (constant index_map)
    out_ref:   VMEM (tile, D) f32   -- lane-dense output tile
    """
    tile = out_ref.shape[0]
    base = pl.program_id(0) * tile

    # 8 rows per trip, statically unrolled inside the body: gives the LLO
    # scheduler a window of independent SMEM index reads + VMEM row copies to
    # overlap, without blowing up code size.
    @pl.loop(0, tile // 8)
    def _(j):
        j8 = j * 8
        for k in range(8):
            row = idx_ref[base + j8 + k]
            out_ref[pl.ds(j8 + k, 1), :] = table_ref[pl.ds(row, 1), :]


def _round_up(a: int, m: int) -> int:
    return (a + m - 1) // m * m


def rvq_multi_embedding_forward(x, tables, *, token_tile=512):
    """x: (B, T) integer tokens; tables: (L, V, D) float32.  Returns (B, T, D) f32."""
    B, T = x.shape
    L, V, D = tables.shape

    # Layer used at sequence position t: (t - 1) mod L
    # (equivalent to torch's x[:, (idx+1)%4::4] assignment pattern).
    t_idx = jnp.arange(T, dtype=jnp.int32)
    layer_of_t = (t_idx - 1) % L                               # (T,)

    flat_table = tables.reshape(L * V, D)                      # (L*V, D)
    full_idx = (x.astype(jnp.int32) + layer_of_t[None, :] * V).reshape(B * T)
    # Clip defensively: an out-of-range token would otherwise become an
    # out-of-bounds VMEM read (no runtime bounds check on TPU).  Note PyTorch's
    # nn.Embedding would raise instead of clamping.
    full_idx = jnp.clip(full_idx, 0, L * V - 1)

    N = B * T
    # Tile choice: as large as possible (amortize per-step overhead, keep the
    # output store lane/sublane dense) but small enough that the grid has >= 2
    # steps so the "parallel" axis shards across v7x's two TensorCores.
    # Multiple of 8 (sublane granularity and the kernel's unroll-by-8 loop).
    tile = max(8, min(token_tile, _round_up(-(-N // 2), 8)))
    assert tile % 8 == 0
    n_tiles = -(-N // tile)
    N_pad = n_tiles * tile
    if N_pad != N:
        # Padded tail rows gather row 0 in VMEM (cheap) and are sliced off.
        full_idx = jnp.pad(full_idx, (0, N_pad - N))

    # NOTE: scalar-prefetching the whole index vector is fine up to ~100K
    # tokens; for very large B*T, stream per-tile index blocks via an SMEM
    # BlockSpec instead to bound SMEM usage.
    out = pl.pallas_call(
        _gather_rows_kernel,
        out_shape=jax.ShapeDtypeStruct((N_pad, D), jnp.float32),
        grid_spec=pltpu.PrefetchScalarGridSpec(
            num_scalar_prefetch=1,                             # full_idx -> SMEM
            grid=(n_tiles,),
            in_specs=[
                # Whole stacked table as one VMEM block; constant index_map so
                # it is fetched from HBM once and stays resident across steps.
                pl.BlockSpec((L * V, D), lambda i, idx: (0, 0)),
            ],
            out_specs=pl.BlockSpec((tile, D), lambda i, idx: (i, 0)),
        ),
        compiler_params=pltpu.CompilerParams(
            dimension_semantics=("parallel",),                 # megacore-shardable
            vmem_limit_bytes=32 * 1024 * 1024,                 # room for resident table on v5e
        ),
    )(full_idx, flat_table)

    return out[:N].reshape(B, T, D)


if __name__ == "__main__":
    # Small shapes consistent with the module (defaults V=2048, D=256; shrunk
    # here to stay small): 4 layers, vocab 256, dim 128, B=2, T=8.
    L, V, D = 4, 256, 128
    B, T = 2, 8

    key = jax.random.PRNGKey(0)
    k_tab, k_tok = jax.random.split(key)
    # nn.Embedding default init is N(0, 1); deterministic synthetic weights.
    tables = jax.random.normal(k_tab, (L, V, D), dtype=jnp.float32)
    x = jax.random.randint(k_tok, (B, T), 0, V, dtype=jnp.int32)

    out = jax.block_until_ready(rvq_multi_embedding_forward(x, tables))

    # Plain-JAX reference mirroring the PyTorch forward.
    layer_of_t = (jnp.arange(T) - 1) % L
    ref = tables[layer_of_t[None, :], x]                      # (B, T, D)

    assert out.shape == (B, T, D)
    assert out.dtype == jnp.float32
    # Pure memory gather -> bit-exact vs reference.
    assert jnp.array_equal(out, ref), "mismatch vs reference"
    print("KERNEL_OK")
</pallas_src>

<mosaic_0001>
module attributes {stable_mosaic.version = 11 : i64} {
  func.func @_gather_rows_kernel(%arg0: i32, %arg1: memref<16xi32, #tpu.memory_space<smem>>, %arg2: memref<1024x128xf32, #tpu.memory_space<vmem>>, %arg3: memref<8x128xf32, #tpu.memory_space<vmem>>) attributes {dimension_semantics = [#tpu.dimension_semantics<parallel>], iteration_bounds = array<i64: 2>, scalar_prefetch = 1 : i64, scratch_operands = 0 : i64, tpu.core_type = #tpu.core_type<tc>, window_params = [{pipeline_mode = #tpu.pipeline_mode<synchronous>, transform_indices = @transform_0, window_bounds = array<i64: 1024, 128>}, {transform_indices = @transform_1, window_bounds = array<i64: 8, 128>}]} {
    %c8_i32 = arith.constant 8 : i32
    %0 = arith.muli %arg0, %c8_i32 : i32
    %c0_i32 = arith.constant 0 : i32
    %c1_i32 = arith.constant 1 : i32
    %1 = arith.muli %c0_i32, %c1_i32 : i32
    %c0_i32_0 = arith.constant 0 : i32
    %2 = arith.addi %c0_i32_0, %1 : i32
    %c8_i32_1 = arith.constant 8 : i32
    %3 = arith.muli %2, %c8_i32_1 : i32
    %4 = arith.addi %0, %3 : i32
    %c0_i32_2 = arith.constant 0 : i32
    %5 = arith.addi %4, %c0_i32_2 : i32
    %6 = arith.index_cast %5 : i32 to index
    %7 = memref.load %arg1[%6] : memref<16xi32, #tpu.memory_space<smem>>
    %8 = arith.index_cast %7 : i32 to index
    %c0 = arith.constant 0 : index
    %9 = vector.load %arg2[%8, %c0] : memref<1024x128xf32, #tpu.memory_space<vmem>>, vector<1x128xf32>
    %c0_i32_3 = arith.constant 0 : i32
    %10 = arith.addi %3, %c0_i32_3 : i32
    %11 = arith.index_cast %10 : i32 to index
    %c0_4 = arith.constant 0 : index
    %12 = vector.load %arg3[%11, %c0_4] : memref<8x128xf32, #tpu.memory_space<vmem>>, vector<1x128xf32>
    tpu.vector_store %arg3[%11, %c0_4], %9 {strides = array<i32>} : memref<8x128xf32, #tpu.memory_space<vmem>>, vector<1x128xf32>,
    %13 = arith.addi %0, %3 : i32
    %c1_i32_5 = arith.constant 1 : i32
    %14 = arith.addi %13, %c1_i32_5 : i32
    %15 = arith.index_cast %14 : i32 to index
    %16 = memref.load %arg1[%15] : memref<16xi32, #tpu.memory_space<smem>>
    %17 = arith.index_cast %16 : i32 to index
    %c0_6 = arith.constant 0 : index
    %18 = vector.load %arg2[%17, %c0_6] : memref<1024x128xf32, #tpu.memory_space<vmem>>, vector<1x128xf32>
    %c1_i32_7 = arith.constant 1 : i32
    %19 = arith.addi %3, %c1_i32_7 : i32
    %20 = arith.index_cast %19 : i32 to index
    %c0_8 = arith.constant 0 : index
    %21 = vector.load %arg3[%20, %c0_8] : memref<8x128xf32, #tpu.memory_space<vmem>>, vector<1x128xf32>
    tpu.vector_store %arg3[%20, %c0_8], %18 {strides = array<i32>} : memref<8x128xf32, #tpu.memory_space<vmem>>, vector<1x128xf32>,
    %22 = arith.addi %0, %3 : i32
    %c2_i32 = arith.constant 2 : i32
    %23 = arith.addi %22, %c2_i32 : i32
    %24 = arith.index_cast %23 : i32 to index
    %25 = memref.load %arg1[%24] : memref<16xi32, #tpu.memory_space<smem>>
    %26 = arith.index_cast %25 : i32 to index
    %c0_9 = arith.constant 0 : index
    %27 = vector.load %arg2[%26, %c0_9] : memref<1024x128xf32, #tpu.memory_space<vmem>>, vector<1x128xf32>
    %c2_i32_10 = arith.constant 2 : i32
    %28 = arith.addi %3, %c2_i32_10 : i32
    %29 = arith.index_cast %28 : i32 to index
    %c0_11 = arith.constant 0 : index
    %30 = vector.load %arg3[%29, %c0_11] : memref<8x128xf32, #tpu.memory_space<vmem>>, vector<1x128xf32>
    tpu.vector_store %arg3[%29, %c0_11], %27 {strides = array<i32>} : memref<8x128xf32, #tpu.memory_space<vmem>>, vector<1x128xf32>,
    %31 = arith.addi %0, %3 : i32
    %c3_i32 = arith.constant 3 : i32
    %32 = arith.addi %31, %c3_i32 : i32
    %33 = arith.index_cast %32 : i32 to index
    %34 = memref.load %arg1[%33] : memref<16xi32, #tpu.memory_space<smem>>
    %35 = arith.index_cast %34 : i32 to index
    %c0_12 = arith.constant 0 : index
    %36 = vector.load %arg2[%35, %c0_12] : memref<1024x128xf32, #tpu.memory_space<vmem>>, vector<1x128xf32>
    %c3_i32_13 = arith.constant 3 : i32
    %37 = arith.addi %3, %c3_i32_13 : i32
    %38 = arith.index_cast %37 : i32 to index
    %c0_14 = arith.constant 0 : index
    %39 = vector.load %arg3[%38, %c0_14] : memref<8x128xf32, #tpu.memory_space<vmem>>, vector<1x128xf32>
    tpu.vector_store %arg3[%38, %c0_14], %36 {strides = array<i32>} : memref<8x128xf32, #tpu.memory_space<vmem>>, vector<1x128xf32>,
    %40 = arith.addi %0, %3 : i32
    %c4_i32 = arith.constant 4 : i32
    %41 = arith.addi %40, %c4_i32 : i32
    %42 = arith.index_cast %41 : i32 to index
    %43 = memref.load %arg1[%42] : memref<16xi32, #tpu.memory_space<smem>>
    %44 = arith.index_cast %43 : i32 to index
    %c0_15 = arith.constant 0 : index
    %45 = vector.load %arg2[%44, %c0_15] : memref<1024x128xf32, #tpu.memory_space<vmem>>, vector<1x128xf32>
    %c4_i32_16 = arith.constant 4 : i32
    %46 = arith.addi %3, %c4_i32_16 : i32
    %47 = arith.index_cast %46 : i32 to index
    %c0_17 = arith.constant 0 : index
    %48 = vector.load %arg3[%47, %c0_17] : memref<8x128xf32, #tpu.memory_space<vmem>>, vector<1x128xf32>
    tpu.vector_store %arg3[%47, %c0_17], %45 {strides = array<i32>} : memref<8x128xf32, #tpu.memory_space<vmem>>, vector<1x128xf32>,
    %49 = arith.addi %0, %3 : i32
    %c5_i32 = arith.constant 5 : i32
    %50 = arith.addi %49, %c5_i32 : i32
    %51 = arith.index_cast %50 : i32 to index
    %52 = memref.load %arg1[%51] : memref<16xi32, #tpu.memory_space<smem>>
    %53 = arith.index_cast %52 : i32 to index
    %c0_18 = arith.constant 0 : index
    %54 = vector.load %arg2[%53, %c0_18] : memref<1024x128xf32, #tpu.memory_space<vmem>>, vector<1x128xf32>
    %c5_i32_19 = arith.constant 5 : i32
    %55 = arith.addi %3, %c5_i32_19 : i32
    %56 = arith.index_cast %55 : i32 to index
    %c0_20 = arith.constant 0 : index
    %57 = vector.load %arg3[%56, %c0_20] : memref<8x128xf32, #tpu.memory_space<vmem>>, vector<1x128xf32>
    tpu.vector_store %arg3[%56, %c0_20], %54 {strides = array<i32>} : memref<8x128xf32, #tpu.memory_space<vmem>>, vector<1x128xf32>,
    %58 = arith.addi %0, %3 : i32
    %c6_i32 = arith.constant 6 : i32
    %59 = arith.addi %58, %c6_i32 : i32
    %60 = arith.index_cast %59 : i32 to index
    %61 = memref.load %arg1[%60] : memref<16xi32, #tpu.memory_space<smem>>
    %62 = arith.index_cast %61 : i32 to index
    %c0_21 = arith.constant 0 : index
    %63 = vector.load %arg2[%62, %c0_21] : memref<1024x128xf32, #tpu.memory_space<vmem>>, vector<1x128xf32>
    %c6_i32_22 = arith.constant 6 : i32
    %64 = arith.addi %3, %c6_i32_22 : i32
    %65 = arith.index_cast %64 : i32 to index
    %c0_23 = arith.constant 0 : index
    %66 = vector.load %arg3[%65, %c0_23] : memref<8x128xf32, #tpu.memory_space<vmem>>, vector<1x128xf32>
    tpu.vector_store %arg3[%65, %c0_23], %63 {strides = array<i32>} : memref<8x128xf32, #tpu.memory_space<vmem>>, vector<1x128xf32>,
    %67 = arith.addi %0, %3 : i32
    %c7_i32 = arith.constant 7 : i32
    %68 = arith.addi %67, %c7_i32 : i32
    %69 = arith.index_cast %68 : i32 to index
    %70 = memref.load %arg1[%69] : memref<16xi32, #tpu.memory_space<smem>>
    %71 = arith.index_cast %70 : i32 to index
    %c0_24 = arith.constant 0 : index
    %72 = vector.load %arg2[%71, %c0_24] : memref<1024x128xf32, #tpu.memory_space<vmem>>, vector<1x128xf32>
    %c7_i32_25 = arith.constant 7 : i32
    %73 = arith.addi %3, %c7_i32_25 : i32
    %74 = arith.index_cast %73 : i32 to index
    %c0_26 = arith.constant 0 : index
    %75 = vector.load %arg3[%74, %c0_26] : memref<8x128xf32, #tpu.memory_space<vmem>>, vector<1x128xf32>
    tpu.vector_store %arg3[%74, %c0_26], %72 {strides = array<i32>} : memref<8x128xf32, #tpu.memory_space<vmem>>, vector<1x128xf32>,
    %c1_i32_27 = arith.constant 1 : i32
    return
  }
  func.func @transform_0(%arg0: i32, %arg1: memref<16xi32, #tpu.memory_space<smem>>) -> (i32, i32) {
    %c0_i32 = arith.constant 0 : i32
    %c0_i32_0 = arith.constant 0 : i32
    %c0_i32_1 = arith.constant 0 : i32
    return %c0_i32, %c0_i32_0 : i32, i32
  }
  func.func @transform_1(%arg0: i32, %arg1: memref<16xi32, #tpu.memory_space<smem>>) -> (i32, i32) {
    %c0_i32 = arith.constant 0 : i32
    %c0_i32_0 = arith.constant 0 : i32
    return %arg0, %c0_i32 : i32, i32
  }
}

</mosaic_0001>

<llo_original>
// kernel: tpu_custom_call.1
$region0: #{tpu_custom_call.1}
  #allocation0 [shape = 'u32[]', space=smem, size = 0x4, offset = 0x4, fixed_abs, tag = 'smem constant byte address 0x4 - core index']
  #allocation1 [shape = 'u32[144,128]{1,0:T(1,128)}', space=vmem, size = 0x12000, scoped, tag = 'internal scratch']
  #allocation2 [shape = 's32[1]{0}', space=sflag, size = 0x4, scoped, tag = 'scoped memory for tpu_custom_call.1']
  #allocation3 [shape = 'u8[512]{0}', space=smem, size = 0x200, scoped, tag = 'prefetched SMEM operand 0']
  %s0 = inlined_call_operand.hbm [shape: s32[16], index: 0, kind: input, shape index: {}]
  %s1 = inlined_call_operand.hbm [shape: f32[1024,128], index: 1, kind: input, shape index: {}]
  %s2 = inlined_call_operand.hbm [shape: f32[16,128], index: 2, kind: output, shape index: {}]
  %s3 = sld [smem:[#allocation0]]
  $region41: #{tpu_custom_call.1} parent=0
    _
  %s5 = ssub.s32 1, %s3
  %s6 = scalar_select 0, %s5, %s3
  %8 = dma.hbm_to_smem %s0, 16, [#allocation3], [#allocation2]
  %9 = dma.done [#allocation2], 16
  %10 = sfence
  $region1: #{tpu_custom_call.1} parent=0
    #allocation4 [shape = 'u8[524288]{0}', space=vmem, size = 0x80000, scoped, tag = 'input window, operand 1, single buffered']
    #allocation5 [shape = 's32[2]{0}', space=sflag, size = 0x8, scoped, tag = 'scoped memory for tpu_custom_call.1']
    #allocation6 [shape = 's32[2]{0}', space=sflag, size = 0x8, scoped, tag = 'scoped memory for tpu_custom_call.1']
    #allocation7 [shape = 'u8[8192]{0}', space=vmem, size = 0x2000, scoped, tag = 'output window, operand 0']
    %11 = vsyncpa [#allocation5], 0
    %12 = vsyncpa [#allocation6], 0
    %s13 = scalar_lea.sflag [#allocation6], 1
    %14 = vsyncpa %s13, 0
    loop: start=0, step=1, limit=4
    $region2: #{tpu_custom_call.1} parent=1 // loop_pre_header
      _
    $region3: #{tpu_custom_call.1} parent=1 // loop_header
      %s16 = sphi 0, %s20
      %p17 = scmp.ge.s32.totalorder %s16, 4
      %s24 = sphi 0, %s24
      %s26 = sphi 0, %s24
      %s27 = sphi 0, %s26
      %s41 = sphi 0, %s27
      %s47 = sphi 0, %s49
      %s50 = sphi 0, %s47
      %s51 = sphi 0, %s50
      %s67 = sphi 0, %s51
    $region4: #{tpu_custom_call.1} parent=1 // loop_header_branch
      %19 = sbr.rel (%p17) target = $region8
    $region5: #{tpu_custom_call.1} parent=1 // loop_body
      %s21 = ssub.s32 %s16, 1
      %s22 = ssub.s32 %s16, 2
      %s23 = sadd.s32 %s16, 1
      %s25 = sadd.s32 %s24, 1
      %p28 = scmp.eq.s32.totalorder %s16, 1
      %p29 = scmp.ne.s32.totalorder %s24, %s26
      %p30 = scmp.eq.s32.totalorder %s16, 0
      %p31 = por %p29, %p30
      %p32 = scmp.ne.s32.totalorder %s24, %s26
      %p33 = scmp.eq.s32.totalorder %s21, 1
      %p34 = por %p32, %p33
      %p35 = scmp.ne.s32.totalorder %s26, %s27
      %p36 = scmp.eq.s32.totalorder %s21, 0
      %p37 = por %p35, %p36
      %p38 = scmp.ne.s32.totalorder %s26, %s27
      %p39 = scmp.eq.s32.totalorder %s22, 1
      %p40 = por %p38, %p39
      %p42 = scmp.ne.s32.totalorder %s27, %s41
      %p43 = scmp.eq.s32.totalorder %s22, 0
      %p44 = por %p42, %p43
      %s45 = ssub.s32 %s16, %s23
      %p46 = scmp.eq.s32.totalorder %s45, 0
      %s48 = sadd.s32 %s47, 1
      %s49 = scalar_select %p46, %s47, %s48
      %p52 = pneg %p46
      %p53 = scmp.eq.s32.totalorder %s16, 1
      %p54 = por %p52, %p53
      %p55 = scmp.ne.s32.totalorder %s47, %s50
      %p56 = scmp.eq.s32.totalorder %s16, 0
      %p57 = por %p55, %p56
      %p58 = scmp.ne.s32.totalorder %s47, %s50
      %p59 = scmp.eq.s32.totalorder %s21, 1
      %p60 = por %p58, %p59
      %p61 = scmp.ne.s32.totalorder %s50, %s51
      %p62 = scmp.eq.s32.totalorder %s21, 0
      %p63 = por %p61, %p62
      %p64 = scmp.ne.s32.totalorder %s50, %s51
      %p65 = scmp.eq.s32.totalorder %s22, 1
      %p66 = por %p64, %p65
      %p68 = scmp.ne.s32.totalorder %s51, %s67
      %p69 = scmp.eq.s32.totalorder %s22, 0
      %p70 = por %p68, %p69
      %p71 = scmp.le.s32.totalorder 1, %s16
      %p72 = scmp.lt.s32.totalorder %s16, 3
      %p73 = pnand %p71, %p72
      %p74 = pneg %p73
      // Predicated region
      $region9: #{tpu_custom_call.1} parent=5 // pred_check
        _
      $region10: #{tpu_custom_call.1} parent=5 // pred_check_branch
        %76 = sbr.rel (%p73) target = $region12
      $region11: #{tpu_custom_call.1} parent=5 // pred_region
        %s77 = ssub.s32 %s16, 1
        // Predicated region
        $region13: #{tpu_custom_call.1} parent=11 // pred_check
          %p78 = pneg %p37
        $region14: #{tpu_custom_call.1} parent=11 // pred_check_branch
          %80 = sbr.rel (%p78) target = $region16
        $region15: #{tpu_custom_call.1} parent=11 // pred_region
          %s82 = ssub.s32 16384, 16384
          %83 = vsyncadd [#allocation5], %s82
          %s84 = sshll.u32 [#allocation4], 4
          %s85 = int_to_ptr.vmem [resolvable:$true] %s84
          %90 = dma.hbm_to_vmem [thread:$0]  %s1, 16384, %s85, [#allocation5], 128, 128, 8
        $region16: #{tpu_custom_call.1} parent=11 // pred_fallthru
          _
      $region12: #{tpu_custom_call.1} parent=5 // pred_fallthru
        _
      %p91 = scmp.lt.s32.totalorder %s16, 2
      // Predicated region
      $region17: #{tpu_custom_call.1} parent=5 // pred_check
        %p92 = pneg %p91
      $region18: #{tpu_custom_call.1} parent=5 // pred_check_branch
        %94 = sbr.rel (%p92) target = $region20
      $region19: #{tpu_custom_call.1} parent=5 // pred_region
        _
      $region20: #{tpu_custom_call.1} parent=5 // pred_fallthru
        _
      %p95 = scmp.le.s32.totalorder 1, %s16
      %p96 = scmp.lt.s32.totalorder %s16, 3
      %p97 = pnand %p95, %p96
      %p98 = pneg %p97
      // Predicated region
      $region21: #{tpu_custom_call.1} parent=5 // pred_check
        _
      $region22: #{tpu_custom_call.1} parent=5 // pred_check_branch
        %100 = sbr.rel (%p97) target = $region24
      $region23: #{tpu_custom_call.1} parent=5 // pred_region
        %s101 = ssub.s32 %s16, 1
        // Predicated region
        $region25: #{tpu_custom_call.1} parent=23 // pred_check
          %p102 = pneg %p37
        $region26: #{tpu_custom_call.1} parent=23 // pred_check_branch
          %104 = sbr.rel (%p102) target = $region28
        $region27: #{tpu_custom_call.1} parent=23 // pred_region
          %105 = dma.done [#allocation5], 16384
        $region28: #{tpu_custom_call.1} parent=23 // pred_fallthru
          _
        %p106 = pneg %p37
        %p107 = pneg %p34
        %p108 = pneg %p63
        %p109 = pneg %p60
        %s110 = sand.u32 %s50, 1
        %s111 = scalar_lea.sflag [#allocation6], %s110
        %s112 = sand.u32 %s50, 1
        %s113 = smul.addr %s112, 8
        %s114 = scalar_lea.vmem [#allocation7], %s113
        %s115 = smul.u32 %s21, 8
        %s116 = sld [smem:[#allocation3 + %s115]]
        %s117 = scalar_lea.vmem [#allocation4], %s116
        %v118 = vld [vmem:[%s117] sm:$0x1]
        %119 = vst [vmem:[%s114] sm:$0x1] %v118
        %s120 = sadd.s32 %s115, 1
        %s121 = sld [smem:[#allocation3 + %s120]]
        %s122 = scalar_lea.vmem [#allocation4], %s121
        %v123 = vld [vmem:[%s122] sm:$0x1]
        %124 = vst [vmem:[%s114 + $0x1] sm:$0x1] %v123
        %s125 = sadd.s32 %s115, 2
        %s126 = sld [smem:[#allocation3 + %s125]]
        %s127 = scalar_lea.vmem [#allocation4], %s126
        %v128 = vld [vmem:[%s127] sm:$0x1]
        %129 = vst [vmem:[%s114 + $0x2] sm:$0x1] %v128
        %s130 = sadd.s32 %s115, 3
        %s131 = sld [smem:[#allocation3 + %s130]]
        %s132 = scalar_lea.vmem [#allocation4], %s131
        %v133 = vld [vmem:[%s132] sm:$0x1]
        %134 = vst [vmem:[%s114 + $0x3] sm:$0x1] %v133
        %s135 = sadd.s32 %s115, 4
        %s136 = sld [smem:[#allocation3 + %s135]]
        %s137 = scalar_lea.vmem [#allocation4], %s136
        %v138 = vld [vmem:[%s137] sm:$0x1]
        %139 = vst [vmem:[%s114 + $0x4] sm:$0x1] %v138
        %s140 = sadd.s32 %s115, 5
        %s141 = sld [smem:[#allocation3 + %s140]]
        %s142 = scalar_lea.vmem [#allocation4], %s141
        %v143 = vld [vmem:[%s142] sm:$0x1]
        %144 = vst [vmem:[%s114 + $0x5] sm:$0x1] %v143
        %s145 = sadd.s32 %s115, 6
        %s146 = sld [smem:[#allocation3 + %s145]]
        %s147 = scalar_lea.vmem [#allocation4], %s146
        %v148 = vld [vmem:[%s147] sm:$0x1]
        %149 = vst [vmem:[%s114 + $0x6] sm:$0x1] %v148
        %s150 = sadd.s32 %s115, 7
        %s151 = sld [smem:[#allocation3 + %s150]]
        %s152 = scalar_lea.vmem [#allocation4], %s151
        %v153 = vld [vmem:[%s152] sm:$0x1]
        %154 = vst [vmem:[%s114 + $0x7] sm:$0x1] %v153
        %s155 = sand.u32 %s50, 1
        %s156 = scalar_lea.sflag [#allocation6], %s155
        %s157 = sand.u32 %s50, 1
        %s158 = smul.addr %s157, 8
        %s159 = scalar_lea.vmem [#allocation7], %s158
        // Predicated region
        $region29: #{tpu_custom_call.1} parent=23 // pred_check
          %p160 = pneg %p60
        $region30: #{tpu_custom_call.1} parent=23 // pred_check_branch
          %162 = sbr.rel (%p160) target = $region32
        $region31: #{tpu_custom_call.1} parent=23 // pred_region
          %s164 = ssub.s32 128, 128
          %165 = vsyncadd %s156, %s164
          %s166 = smul.addr %s21, 128
          %s167 = scalar_lea.hbm %s2, %s166
          %s169 = sshll.u32 %s159, 4
          %s170 = int_to_ptr.vmem [resolvable:$true] %s169
          %172 = dma.vmem_to_hbm [thread:$0]  %s170, 128, %s167, %s156
        $region32: #{tpu_custom_call.1} parent=23 // pred_fallthru
          _
      $region24: #{tpu_custom_call.1} parent=5 // pred_fallthru
        _
      %p173 = scmp.le.s32.totalorder 2, %s16
      // Predicated region
      $region33: #{tpu_custom_call.1} parent=5 // pred_check
        %p174 = pneg %p173
      $region34: #{tpu_custom_call.1} parent=5 // pred_check_branch
        %176 = sbr.rel (%p174) target = $region36
      $region35: #{tpu_custom_call.1} parent=5 // pred_region
        %s177 = ssub.s32 %s16, 2
        // Predicated region
        $region37: #{tpu_custom_call.1} parent=35 // pred_check
          %p178 = pneg %p66
        $region38: #{tpu_custom_call.1} parent=35 // pred_check_branch
          %180 = sbr.rel (%p178) target = $region40
        $region39: #{tpu_custom_call.1} parent=35 // pred_region
          %s181 = sand.u32 %s51, 1
          %s182 = scalar_lea.sflag [#allocation6], %s181
          %s183 = sand.u32 %s51, 1
          %s184 = smul.addr %s183, 8
          %s185 = scalar_lea.vmem [#allocation7], %s184
          %186 = dma.done %s182, 128
        $region40: #{tpu_custom_call.1} parent=35 // pred_fallthru
          _
      $region36: #{tpu_custom_call.1} parent=5 // pred_fallthru
        _
    $region6: #{tpu_custom_call.1} parent=1 // loop_footer
      %s20 = sadd.s32 1, %s16
    $region7: #{tpu_custom_call.1} parent=1 // loop_footer_branch
      %15 = sbr.rel target = $region3
    $region8: #{tpu_custom_call.1} parent=1 // loop_exit
      _
    %187 = vsyncpa [#allocation5], 1
    %s188 = scalar_lea.sflag [#allocation5], 1
    %189 = vsyncpa %s188, 1
    %190 = vsyncpa [#allocation6], 1
    %s191 = scalar_lea.sflag [#allocation6], 1
    %192 = vsyncpa %s191, 1

</llo_original>
